<compile_context>
chip_gen: v7x
topology: tpu7x:2x2x1
jax: 0.10.0
libtpu: 0.0.40
codegen_flags: <defaults>
</compile_context>

<pallas_src>
import functools

import jax
import jax.numpy as jnp
from jax.experimental import pallas as pl
from jax.experimental.pallas import tpu as pltpu

LEAKY_SLOPE = 0.2
BN_EPS = 1e-5


def _leaky_relu(x):
    return jnp.where(x > 0, x, LEAKY_SLOPE * x)


def _mxu_dot(x, w):
    # Cast the activation to the weight dtype (bf16 weights => bf16 MXU matmul
    # on v6e/v7x); accumulate in f32 either way.
    return jnp.dot(x.astype(w.dtype), w, preferred_element_type=jnp.float32)


def setop_kernel(a_ref, b_ref, w0a_ref, w0b_ref, b0_ref, wh_ref, bh_ref,
                 wo_ref, bo_ref, out_ref, *, layers_num):
    # Input projection (concat folded into two accumulated matmuls) + LeakyReLU.
    h = (_mxu_dot(a_ref[...], w0a_ref[...])
         + _mxu_dot(b_ref[...], w0b_ref[...])
         + b0_ref[...])
    h = _leaky_relu(h)

    # Hidden stack. BatchNorm1d(eval) is pre-folded into wh/bh host-side.
    for i in range(layers_num):  # static unroll (layers_num is tiny)
        h = _mxu_dot(h, wh_ref[i]) + bh_ref[i]
        h = _leaky_relu(h)
        # TODO(synk): nn.Dropout(p) is identity in eval mode; training-mode mask not implemented.

    out_ref[...] = (_mxu_dot(h, wo_ref[...]) + bo_ref[...]).astype(out_ref.dtype)


def _block_diag(w2d, fold):
    """fold-way block-diagonal replication of a 2-D weight."""
    if fold == 1:
        return w2d
    return jnp.kron(jnp.eye(fold, dtype=w2d.dtype), w2d)


def prepare_params(params, input_dim, *, weight_dtype=jnp.float32):
    """Fold eval-mode BN into the hidden Linears, split W0, build the fold-8
    lane-dense (block-diagonal) weights.  Pure JAX, run once at load time."""
    D = input_dim
    w0 = params["w0"]                                   # (2*D, L)
    L = w0.shape[1]
    layers_num = params["wh"].shape[0]
    fold = (128 // D) if (128 % D == 0 and D < 128) else 1

    w0a, w0b = w0[:D], w0[D:]
    gamma = params["bn"][:, 0]                          # (layers, L)
    beta = params["bn"][:, 1]
    mean = params["bn"][:, 2]
    var = params["bn"][:, 3]
    scale = gamma * jax.lax.rsqrt(var + BN_EPS)         # (layers, L)
    shift = beta - mean * scale                         # (layers, L)
    # BN: y = h*scale + shift ; Linear: y @ W + b = h @ (scale[:,None]*W) + (shift @ W + b)
    wh = params["wh"]                                   # (layers, L, L)
    wh_f = scale[:, :, None] * wh
    bh_f = params["bh"] + jnp.einsum("lk,lkn->ln", shift, wh)[:, None, :]

    # Lane-dense folding: block-diagonal weights, lane-tiled biases.
    w0a_bd = _block_diag(w0a, fold)                     # (fold*D, fold*L)
    w0b_bd = _block_diag(w0b, fold)
    wh_bd = jnp.stack([_block_diag(wh_f[i], fold) for i in range(layers_num)])
    wo_bd = _block_diag(params["wo"], fold)             # (fold*L, fold*D)
    b0_t = jnp.tile(params["b0"], (1, fold))            # (1, fold*L)
    bh_t = jnp.tile(bh_f, (1, 1, fold))                 # (layers, 1, fold*L)
    bo_t = jnp.tile(params["bo"], (1, fold))            # (1, fold*D)

    return dict(
        fold=fold, D=D, L=L, layers_num=layers_num,
        w0a=w0a_bd.astype(weight_dtype),
        w0b=w0b_bd.astype(weight_dtype),
        b0=b0_t.astype(jnp.float32),
        wh=wh_bd.astype(weight_dtype),
        bh=bh_t.astype(jnp.float32),
        wo=wo_bd.astype(weight_dtype),
        bo=bo_t.astype(jnp.float32),
    )


def setop_block_v2(a, b, prepared, *, block_rows=8192):
    """Fused SetOpBlock_v2 forward (eval mode).

    block_rows: batch-tile size in ORIGINAL rows.  The kernel is memory-bound
    at these feature widths; the default keeps the double-buffered (a, b, out)
    tiles + resident weights well under the scoped VMEM limit on v5e/v6e/v7x.
    """
    N, D = a.shape
    assert b.shape == (N, D)
    assert D == prepared["D"]
    fold = prepared["fold"]
    L = prepared["L"]
    layers_num = prepared["layers_num"]
    Df, Lf = fold * D, fold * L

    # Work in folded-row units: (N, D) row-major == (N/fold, fold*D).
    rows = pl.cdiv(N, fold)
    max_tf = max(block_rows // fold, 8)
    if rows <= max_tf:
        tf = rows                                # single full-array tile (always legal)
        rows_pad = rows
    else:
        tf = (max_tf // 8) * 8                   # (8,128) sublane alignment
        rows_pad = pl.cdiv(rows, tf) * tf
    n_pad = rows_pad * fold
    if n_pad != N:
        # Rows are independent, so zero-padding the ragged tail is exact.
        a = jnp.pad(a, ((0, n_pad - N), (0, 0)))
        b = jnp.pad(b, ((0, n_pad - N), (0, 0)))
    a_f = a.reshape(rows_pad, Df)                # free row-major reinterpretation
    b_f = b.reshape(rows_pad, Df)

    kernel = functools.partial(setop_kernel, layers_num=layers_num)

    tile = lambda i: (i, 0)                      # streamed batch tiles
    whole2 = lambda i: (0, 0)                    # resident 2-D weights
    whole3 = lambda i: (0, 0, 0)                 # resident 3-D weights

    wkeys = ("w0a", "w0b", "b0", "wh", "bh", "wo", "bo")
    wbytes = sum(int(prepared[k].size) * prepared[k].dtype.itemsize for k in wkeys)
    cost = pl.CostEstimate(
        flops=2 * n_pad * (2 * D * L + layers_num * L * L + L * D),
        transcendentals=0,
        bytes_accessed=3 * n_pad * D * 4 + wbytes,
    )

    out = pl.pallas_call(
        kernel,
        out_shape=jax.ShapeDtypeStruct((rows_pad, Df), jnp.float32),
        grid=(rows_pad // tf,),
        in_specs=[
            pl.BlockSpec((tf, Df), tile),                 # a (folded)
            pl.BlockSpec((tf, Df), tile),                 # b (folded)
            pl.BlockSpec((Df, Lf), whole2),               # w0a (block-diag)
            pl.BlockSpec((Df, Lf), whole2),               # w0b (block-diag)
            pl.BlockSpec((1, Lf), whole2),                # b0 (lane-tiled)
            pl.BlockSpec((layers_num, Lf, Lf), whole3),   # wh (BN-folded, block-diag)
            pl.BlockSpec((layers_num, 1, Lf), whole3),    # bh (BN-folded, lane-tiled)
            pl.BlockSpec((Lf, Df), whole2),               # wo (block-diag)
            pl.BlockSpec((1, Df), whole2),                # bo (lane-tiled)
        ],
        out_specs=pl.BlockSpec((tf, Df), tile),           # lane-dense output slab
        compiler_params=pltpu.CompilerParams(
            dimension_semantics=("parallel",)),           # megacore sharding
        cost_estimate=cost,
    )(a_f, b_f, prepared["w0a"], prepared["w0b"], prepared["b0"],
      prepared["wh"], prepared["bh"], prepared["wo"], prepared["bo"])

    out = out.reshape(n_pad, D)
    return out[:N] if n_pad != N else out


def make_params(key, input_dim, latent_dim, layers_num):
    """Random parameters matching the PyTorch module's parameter structure."""
    ks = jax.random.split(key, 8)
    f32 = jnp.float32
    w0 = 0.1 * jax.random.normal(ks[0], (2 * input_dim, latent_dim), f32)
    b0 = 0.1 * jax.random.normal(ks[1], (1, latent_dim), f32)
    gamma = 1.0 + 0.1 * jax.random.normal(ks[2], (layers_num, latent_dim), f32)
    beta = 0.1 * jax.random.normal(ks[3], (layers_num, latent_dim), f32)
    mean = 0.1 * jax.random.normal(ks[4], (layers_num, latent_dim), f32)
    var = 1.0 + 0.1 * jnp.abs(jax.random.normal(ks[5], (layers_num, latent_dim), f32))
    bn = jnp.stack([gamma, beta, mean, var], axis=1)      # (layers, 4, L)
    wh = 0.1 * jax.random.normal(ks[6], (layers_num, latent_dim, latent_dim), f32)
    bh = 0.1 * jax.random.normal(ks[7], (layers_num, 1, latent_dim), f32)
    k8, k9 = jax.random.split(jax.random.fold_in(key, 123))
    wo = 0.1 * jax.random.normal(k8, (latent_dim, input_dim), f32)
    bo = 0.1 * jax.random.normal(k9, (1, input_dim), f32)
    return dict(w0=w0, b0=b0, bn=bn, wh=wh, bh=bh, wo=wo, bo=bo)


def reference(a, b, params, *, layers_num=3):
    """Pure-JAX reference matching the PyTorch eval-mode forward (unfolded BN)."""
    hp = jax.lax.Precision.HIGHEST
    h = jnp.concatenate([a, b], axis=1)
    h = _leaky_relu(jnp.dot(h, params["w0"], precision=hp) + params["b0"])
    for i in range(layers_num):
        gamma, beta, mean, var = (params["bn"][i, j] for j in range(4))
        h = (h - mean) * jax.lax.rsqrt(var + BN_EPS) * gamma + beta
        h = _leaky_relu(jnp.dot(h, params["wh"][i], precision=hp) + params["bh"][i])
    return jnp.dot(h, params["wo"], precision=hp) + params["bo"]


if __name__ == "__main__":
    input_dim, latent_dim, layers_num = 16, 32, 3

    key = jax.random.PRNGKey(0)
    ka, kb, kp, kc, kd = jax.random.split(key, 5)
    params = make_params(kp, input_dim, latent_dim, layers_num)
    prep_f32 = prepare_params(params, input_dim)
    assert prep_f32["fold"] == 8

    # Case 1: small batch, single grid step, f32 weights (fold-8 path).
    a1 = jax.random.normal(ka, (8, input_dim), jnp.float32)
    b1 = jax.random.normal(kb, (8, input_dim), jnp.float32)
    out1 = jax.block_until_ready(setop_block_v2(a1, b1, prep_f32))
    ref1 = reference(a1, b1, params, layers_num=layers_num)
    assert out1.shape == (8, input_dim)
    assert jnp.allclose(out1, ref1, atol=1e-2, rtol=1e-2), "f32 small-batch mismatch"

    # Case 2: multi-tile grid with a ragged tail (640 rows, 256-row tiles -> pad to 768).
    a2 = jax.random.normal(kc, (640, input_dim), jnp.float32)
    b2 = jax.random.normal(kd, (640, input_dim), jnp.float32)
    out2 = jax.block_until_ready(setop_block_v2(a2, b2, prep_f32, block_rows=256))
    ref2 = reference(a2, b2, params, layers_num=layers_num)
    assert out2.shape == (640, input_dim)
    assert jnp.allclose(out2, ref2, atol=1e-2, rtol=1e-2), "f32 multi-tile mismatch"

    # Case 3: bf16 weights (v6e/v7x MXU fast path), f32 activations + accumulation.
    prep_bf16 = prepare_params(params, input_dim, weight_dtype=jnp.bfloat16)
    out3 = jax.block_until_ready(setop_block_v2(a2, b2, prep_bf16, block_rows=256))
    assert jnp.allclose(out3, ref2, atol=7e-2, rtol=7e-2), "bf16-weight mismatch"

    # Case 4: input_dim that does not divide 128 -> automatic unfolded fallback.
    input_dim4 = 24
    params4 = make_params(jax.random.fold_in(key, 7), input_dim4, latent_dim, layers_num)
    prep4 = prepare_params(params4, input_dim4)
    assert prep4["fold"] == 1
    a4 = jax.random.normal(jax.random.fold_in(key, 8), (40, input_dim4), jnp.float32)
    b4 = jax.random.normal(jax.random.fold_in(key, 9), (40, input_dim4), jnp.float32)
    out4 = jax.block_until_ready(setop_block_v2(a4, b4, prep4))
    ref4 = reference(a4, b4, params4, layers_num=layers_num)
    assert jnp.allclose(out4, ref4, atol=1e-2, rtol=1e-2), "fold=1 fallback mismatch"

    print("KERNEL_OK")
</pallas_src>

<mosaic_0001>
module attributes {stable_mosaic.version = 11 : i64} {
  func.func @setop_kernel(%arg0: i32, %arg1: memref<1x128xf32, #tpu.memory_space<vmem>>, %arg2: memref<1x128xf32, #tpu.memory_space<vmem>>, %arg3: memref<128x256xf32, #tpu.memory_space<vmem>>, %arg4: memref<128x256xf32, #tpu.memory_space<vmem>>, %arg5: memref<1x256xf32, #tpu.memory_space<vmem>>, %arg6: memref<3x256x256xf32, #tpu.memory_space<vmem>>, %arg7: memref<3x1x256xf32, #tpu.memory_space<vmem>>, %arg8: memref<256x128xf32, #tpu.memory_space<vmem>>, %arg9: memref<1x128xf32, #tpu.memory_space<vmem>>, %arg10: memref<1x128xf32, #tpu.memory_space<vmem>>) attributes {dimension_semantics = [#tpu.dimension_semantics<parallel>], iteration_bounds = array<i64: 1>, scalar_prefetch = 0 : i64, scratch_operands = 0 : i64, tpu.core_type = #tpu.core_type<tc>, window_params = [{transform_indices = @transform_0, window_bounds = array<i64: 1, 128>}, {transform_indices = @transform_1, window_bounds = array<i64: 1, 128>}, {pipeline_mode = #tpu.pipeline_mode<synchronous>, transform_indices = @transform_2, window_bounds = array<i64: 128, 256>}, {pipeline_mode = #tpu.pipeline_mode<synchronous>, transform_indices = @transform_3, window_bounds = array<i64: 128, 256>}, {pipeline_mode = #tpu.pipeline_mode<synchronous>, transform_indices = @transform_4, window_bounds = array<i64: 1, 256>}, {pipeline_mode = #tpu.pipeline_mode<synchronous>, transform_indices = @transform_5, window_bounds = array<i64: 3, 256, 256>}, {pipeline_mode = #tpu.pipeline_mode<synchronous>, transform_indices = @transform_6, window_bounds = array<i64: 3, 1, 256>}, {pipeline_mode = #tpu.pipeline_mode<synchronous>, transform_indices = @transform_7, window_bounds = array<i64: 256, 128>}, {pipeline_mode = #tpu.pipeline_mode<synchronous>, transform_indices = @transform_8, window_bounds = array<i64: 1, 128>}, {transform_indices = @transform_9, window_bounds = array<i64: 1, 128>}]} {
    %c0 = arith.constant 0 : index
    %c0_0 = arith.constant 0 : index
    %0 = vector.load %arg1[%c0, %c0_0] : memref<1x128xf32, #tpu.memory_space<vmem>>, vector<1x128xf32>
    %c0_1 = arith.constant 0 : index
    %c0_2 = arith.constant 0 : index
    %1 = vector.load %arg3[%c0_1, %c0_2] : memref<128x256xf32, #tpu.memory_space<vmem>>, vector<128x256xf32>
    %cst = arith.constant dense<0.000000e+00> : vector<1x256xf32>
    %2 = tpu.matmul %0, %1, %cst {dimension_numbers = #tpu.dot_dimension_numbers<[1], [0], [0], [1], [0, 0, 1, 1], [], []>} : vector<1x128xf32>, vector<128x256xf32>, vector<1x256xf32> -> vector<1x256xf32>
    %c0_3 = arith.constant 0 : index
    %c0_4 = arith.constant 0 : index
    %3 = vector.load %arg2[%c0_3, %c0_4] : memref<1x128xf32, #tpu.memory_space<vmem>>, vector<1x128xf32>
    %c0_5 = arith.constant 0 : index
    %c0_6 = arith.constant 0 : index
    %4 = vector.load %arg4[%c0_5, %c0_6] : memref<128x256xf32, #tpu.memory_space<vmem>>, vector<128x256xf32>
    %cst_7 = arith.constant dense<0.000000e+00> : vector<1x256xf32>
    %5 = tpu.matmul %3, %4, %cst_7 {dimension_numbers = #tpu.dot_dimension_numbers<[1], [0], [0], [1], [0, 0, 1, 1], [], []>} : vector<1x128xf32>, vector<128x256xf32>, vector<1x256xf32> -> vector<1x256xf32>
    %6 = arith.addf %2, %5 : vector<1x256xf32>
    %c0_8 = arith.constant 0 : index
    %c0_9 = arith.constant 0 : index
    %7 = vector.load %arg5[%c0_8, %c0_9] : memref<1x256xf32, #tpu.memory_space<vmem>>, vector<1x256xf32>
    %8 = arith.addf %6, %7 : vector<1x256xf32>
    %cst_10 = arith.constant 0.000000e+00 : f32
    %9 = vector.broadcast %cst_10 : f32 to vector<1x256xf32>
    %10 = arith.cmpf ogt, %8, %9 : vector<1x256xf32>
    %cst_11 = arith.constant 2.000000e-01 : f32
    %11 = vector.broadcast %cst_11 : f32 to vector<1x256xf32>
    %12 = arith.mulf %11, %8 : vector<1x256xf32>
    %13 = arith.select %10, %8, %12 : vector<1x256xi1>, vector<1x256xf32>
    %c0_12 = arith.constant 0 : index
    %c0_13 = arith.constant 0 : index
    %c0_14 = arith.constant 0 : index
    %14 = vector.load %arg6[%c0_12, %c0_13, %c0_14] : memref<3x256x256xf32, #tpu.memory_space<vmem>>, vector<1x256x256xf32>
    %15 = vector.shape_cast %14 : vector<1x256x256xf32> to vector<256x256xf32>
    %cst_15 = arith.constant dense<0.000000e+00> : vector<1x256xf32>
    %16 = tpu.matmul %13, %15, %cst_15 {dimension_numbers = #tpu.dot_dimension_numbers<[1], [0], [0], [1], [0, 0, 1, 1], [], []>} : vector<1x256xf32>, vector<256x256xf32>, vector<1x256xf32> -> vector<1x256xf32>
    %c0_16 = arith.constant 0 : index
    %c0_17 = arith.constant 0 : index
    %c0_18 = arith.constant 0 : index
    %17 = vector.load %arg7[%c0_16, %c0_17, %c0_18] : memref<3x1x256xf32, #tpu.memory_space<vmem>>, vector<1x1x256xf32>
    %18 = vector.shape_cast %17 : vector<1x1x256xf32> to vector<1x256xf32>
    %19 = arith.addf %16, %18 : vector<1x256xf32>
    %cst_19 = arith.constant 0.000000e+00 : f32
    %20 = vector.broadcast %cst_19 : f32 to vector<1x256xf32>
    %21 = arith.cmpf ogt, %19, %20 : vector<1x256xf32>
    %cst_20 = arith.constant 2.000000e-01 : f32
    %22 = vector.broadcast %cst_20 : f32 to vector<1x256xf32>
    %23 = arith.mulf %22, %19 : vector<1x256xf32>
    %24 = arith.select %21, %19, %23 : vector<1x256xi1>, vector<1x256xf32>
    %c1 = arith.constant 1 : index
    %c0_21 = arith.constant 0 : index
    %c0_22 = arith.constant 0 : index
    %25 = vector.load %arg6[%c1, %c0_21, %c0_22] : memref<3x256x256xf32, #tpu.memory_space<vmem>>, vector<1x256x256xf32>
    %26 = vector.shape_cast %25 : vector<1x256x256xf32> to vector<256x256xf32>
    %cst_23 = arith.constant dense<0.000000e+00> : vector<1x256xf32>
    %27 = tpu.matmul %24, %26, %cst_23 {dimension_numbers = #tpu.dot_dimension_numbers<[1], [0], [0], [1], [0, 0, 1, 1], [], []>} : vector<1x256xf32>, vector<256x256xf32>, vector<1x256xf32> -> vector<1x256xf32>
    %c1_24 = arith.constant 1 : index
    %c0_25 = arith.constant 0 : index
    %c0_26 = arith.constant 0 : index
    %28 = vector.load %arg7[%c1_24, %c0_25, %c0_26] : memref<3x1x256xf32, #tpu.memory_space<vmem>>, vector<1x1x256xf32>
    %29 = vector.shape_cast %28 : vector<1x1x256xf32> to vector<1x256xf32>
    %30 = arith.addf %27, %29 : vector<1x256xf32>
    %cst_27 = arith.constant 0.000000e+00 : f32
    %31 = vector.broadcast %cst_27 : f32 to vector<1x256xf32>
    %32 = arith.cmpf ogt, %30, %31 : vector<1x256xf32>
    %cst_28 = arith.constant 2.000000e-01 : f32
    %33 = vector.broadcast %cst_28 : f32 to vector<1x256xf32>
    %34 = arith.mulf %33, %30 : vector<1x256xf32>
    %35 = arith.select %32, %30, %34 : vector<1x256xi1>, vector<1x256xf32>
    %c2 = arith.constant 2 : index
    %c0_29 = arith.constant 0 : index
    %c0_30 = arith.constant 0 : index
    %36 = vector.load %arg6[%c2, %c0_29, %c0_30] : memref<3x256x256xf32, #tpu.memory_space<vmem>>, vector<1x256x256xf32>
    %37 = vector.shape_cast %36 : vector<1x256x256xf32> to vector<256x256xf32>
    %cst_31 = arith.constant dense<0.000000e+00> : vector<1x256xf32>
    %38 = tpu.matmul %35, %37, %cst_31 {dimension_numbers = #tpu.dot_dimension_numbers<[1], [0], [0], [1], [0, 0, 1, 1], [], []>} : vector<1x256xf32>, vector<256x256xf32>, vector<1x256xf32> -> vector<1x256xf32>
    %c2_32 = arith.constant 2 : index
    %c0_33 = arith.constant 0 : index
    %c0_34 = arith.constant 0 : index
    %39 = vector.load %arg7[%c2_32, %c0_33, %c0_34] : memref<3x1x256xf32, #tpu.memory_space<vmem>>, vector<1x1x256xf32>
    %40 = vector.shape_cast %39 : vector<1x1x256xf32> to vector<1x256xf32>
    %41 = arith.addf %38, %40 : vector<1x256xf32>
    %cst_35 = arith.constant 0.000000e+00 : f32
    %42 = vector.broadcast %cst_35 : f32 to vector<1x256xf32>
    %43 = arith.cmpf ogt, %41, %42 : vector<1x256xf32>
    %cst_36 = arith.constant 2.000000e-01 : f32
    %44 = vector.broadcast %cst_36 : f32 to vector<1x256xf32>
    %45 = arith.mulf %44, %41 : vector<1x256xf32>
    %46 = arith.select %43, %41, %45 : vector<1x256xi1>, vector<1x256xf32>
    %c0_37 = arith.constant 0 : index
    %c0_38 = arith.constant 0 : index
    %47 = vector.load %arg8[%c0_37, %c0_38] : memref<256x128xf32, #tpu.memory_space<vmem>>, vector<256x128xf32>
    %cst_39 = arith.constant dense<0.000000e+00> : vector<1x128xf32>
    %48 = tpu.matmul %46, %47, %cst_39 {dimension_numbers = #tpu.dot_dimension_numbers<[1], [0], [0], [1], [0, 0, 1, 1], [], []>} : vector<1x256xf32>, vector<256x128xf32>, vector<1x128xf32> -> vector<1x128xf32>
    %c0_40 = arith.constant 0 : index
    %c0_41 = arith.constant 0 : index
    %49 = vector.load %arg9[%c0_40, %c0_41] : memref<1x128xf32, #tpu.memory_space<vmem>>, vector<1x128xf32>
    %50 = arith.addf %48, %49 : vector<1x128xf32>
    %c0_42 = arith.constant 0 : index
    %c0_43 = arith.constant 0 : index
    %51 = vector.load %arg10[%c0_42, %c0_43] : memref<1x128xf32, #tpu.memory_space<vmem>>, vector<1x128xf32>
    tpu.vector_store %arg10[%c0_42, %c0_43], %50 {strides = array<i32>} : memref<1x128xf32, #tpu.memory_space<vmem>>, vector<1x128xf32>,
    return
  }
  func.func @transform_0(%arg0: i32) -> (i32, i32) {
    %c0_i32 = arith.constant 0 : i32
    %c0_i32_0 = arith.constant 0 : i32
    return %arg0, %c0_i32 : i32, i32
  }
  func.func @transform_1(%arg0: i32) -> (i32, i32) {
    %c0_i32 = arith.constant 0 : i32
    %c0_i32_0 = arith.constant 0 : i32
    return %arg0, %c0_i32 : i32, i32
  }
  func.func @transform_2(%arg0: i32) -> (i32, i32) {
    %c0_i32 = arith.constant 0 : i32
    %c0_i32_0 = arith.constant 0 : i32
    %c0_i32_1 = arith.constant 0 : i32
    return %c0_i32, %c0_i32_0 : i32, i32
  }
  func.func @transform_3(%arg0: i32) -> (i32, i32) {
    %c0_i32 = arith.constant 0 : i32
    %c0_i32_0 = arith.constant 0 : i32
    %c0_i32_1 = arith.constant 0 : i32
    return %c0_i32, %c0_i32_0 : i32, i32
  }
  func.func @transform_4(%arg0: i32) -> (i32, i32) {
    %c0_i32 = arith.constant 0 : i32
    %c0_i32_0 = arith.constant 0 : i32
    %c0_i32_1 = arith.constant 0 : i32
    return %c0_i32, %c0_i32_0 : i32, i32
  }
  func.func @transform_5(%arg0: i32) -> (i32, i32, i32) {
    %c0_i32 = arith.constant 0 : i32
    %c0_i32_0 = arith.constant 0 : i32
    %c0_i32_1 = arith.constant 0 : i32
    %c0_i32_2 = arith.constant 0 : i32
    return %c0_i32, %c0_i32_0, %c0_i32_1 : i32, i32, i32
  }
  func.func @transform_6(%arg0: i32) -> (i32, i32, i32) {
    %c0_i32 = arith.constant 0 : i32
    %c0_i32_0 = arith.constant 0 : i32
    %c0_i32_1 = arith.constant 0 : i32
    %c0_i32_2 = arith.constant 0 : i32
    return %c0_i32, %c0_i32_0, %c0_i32_1 : i32, i32, i32
  }
  func.func @transform_7(%arg0: i32) -> (i32, i32) {
    %c0_i32 = arith.constant 0 : i32
    %c0_i32_0 = arith.constant 0 : i32
    %c0_i32_1 = arith.constant 0 : i32
    return %c0_i32, %c0_i32_0 : i32, i32
  }
  func.func @transform_8(%arg0: i32) -> (i32, i32) {
    %c0_i32 = arith.constant 0 : i32
    %c0_i32_0 = arith.constant 0 : i32
    %c0_i32_1 = arith.constant 0 : i32
    return %c0_i32, %c0_i32_0 : i32, i32
  }
  func.func @transform_9(%arg0: i32) -> (i32, i32) {
    %c0_i32 = arith.constant 0 : i32
    %c0_i32_0 = arith.constant 0 : i32
    return %arg0, %c0_i32 : i32, i32
  }
}

</mosaic_0001>

<llo_original>
// kernel: tpu_custom_call.1
$region0: #{tpu_custom_call.1}
  #allocation0 [shape = 'u32[]', space=smem, size = 0x4, offset = 0x4, fixed_abs, tag = 'smem constant byte address 0x4 - core index']
  #allocation1 [shape = 'u32[144,128]{1,0:T(1,128)}', space=vmem, size = 0x12000, scoped, tag = 'internal scratch']
  %s0 = inlined_call_operand.hbm [shape: f32[1,128], index: 0, kind: input, shape index: {}]
  %s1 = inlined_call_operand.vmem [shape: f32[1,128], index: 1, kind: input, shape index: {}]
  %s2 = inlined_call_operand.hbm [shape: f32[128,256], index: 2, kind: input, shape index: {}]
  %s3 = inlined_call_operand.hbm [shape: f32[128,256], index: 3, kind: input, shape index: {}]
  %s4 = inlined_call_operand.vmem [shape: f32[1,256], index: 4, kind: input, shape index: {}]
  %s5 = inlined_call_operand.hbm [shape: f32[3,256,256], index: 5, kind: input, shape index: {}]
  %s6 = inlined_call_operand.vmem [shape: f32[3,1,256], index: 6, kind: input, shape index: {}]
  %s7 = inlined_call_operand.hbm [shape: f32[256,128], index: 7, kind: input, shape index: {}]
  %s8 = inlined_call_operand.vmem [shape: f32[1,128], index: 8, kind: input, shape index: {}]
  %s9 = inlined_call_operand.hbm [shape: f32[1,128], index: 9, kind: output, shape index: {}]
  %s10 = sld [smem:[#allocation0]]
  $region66: #{tpu_custom_call.1} parent=0
    _
  %s12 = ssub.s32 1, %s10
  %s13 = scalar_select 0, %s12, %s10
  $region1: #{tpu_custom_call.1} parent=0
    #allocation2 [shape = 'u8[512]{0}', space=vmem, size = 0x400, scoped, tag = 'input window, operand 0, single buffered']
    #allocation3 [shape = 's32[1]{0}', space=sflag, size = 0x4, scoped, tag = 'scoped memory for tpu_custom_call.1']
    #allocation4 [shape = 's32[1]{0}', space=sflag, size = 0x4, scoped, tag = 'scoped memory for tpu_custom_call.1']
    #allocation5 [shape = 'u8[131072]{0}', space=vmem, size = 0x20000, scoped, tag = 'input window, operand 2, single buffered']
    #allocation6 [shape = 's32[1]{0}', space=sflag, size = 0x4, scoped, tag = 'scoped memory for tpu_custom_call.1']
    #allocation7 [shape = 'u8[131072]{0}', space=vmem, size = 0x20000, scoped, tag = 'input window, operand 3, single buffered']
    #allocation8 [shape = 'u8[786432]{0}', space=vmem, size = 0xc0000, scoped, tag = 'input window, operand 5, single buffered']
    #allocation9 [shape = 's32[1]{0}', space=sflag, size = 0x4, scoped, tag = 'scoped memory for tpu_custom_call.1']
    #allocation10 [shape = 'u8[131072]{0}', space=vmem, size = 0x20000, scoped, tag = 'input window, operand 7, single buffered']
    #allocation11 [shape = 'u8[512]{0}', space=vmem, size = 0x400, scoped, tag = 'output window, operand 0, single buffered']
    %14 = vsyncpa [#allocation3], 0
    %15 = vsyncpa [#allocation6], 0
    %16 = vsyncpa [#allocation9], 0
    %17 = vsyncpa [#allocation4], 0
    // Predicated region
    $region2: #{tpu_custom_call.1} parent=1 // pred_check
      _
    $region3: #{tpu_custom_call.1} parent=1 // pred_check_branch
      %19 = sbr.rel (0) target = $region5
    $region4: #{tpu_custom_call.1} parent=1 // pred_region
      %s21 = ssub.s32 16, 16
      %22 = vsyncadd [#allocation3], %s21
      %s24 = sshll.u32 [#allocation2], 4
      %s25 = int_to_ptr.vmem [resolvable:$true] %s24
      %27 = dma.hbm_to_vmem [thread:$0]  %s0, 16, %s25, [#allocation3]
    $region5: #{tpu_custom_call.1} parent=1 // pred_fallthru
      _
    // Predicated region
    $region6: #{tpu_custom_call.1} parent=1 // pred_check
      _
    $region7: #{tpu_custom_call.1} parent=1 // pred_check_branch
      %29 = sbr.rel (0) target = $region9
    $region8: #{tpu_custom_call.1} parent=1 // pred_region
      _
    $region9: #{tpu_custom_call.1} parent=1 // pred_fallthru
      _
    // Predicated region
    $region10: #{tpu_custom_call.1} parent=1 // pred_check
      _
    $region11: #{tpu_custom_call.1} parent=1 // pred_check_branch
      %31 = sbr.rel (0) target = $region13
    $region12: #{tpu_custom_call.1} parent=1 // pred_region
      %s33 = ssub.s32 4096, 4096
      %34 = vsyncadd [#allocation6], %s33
      %s35 = sshll.u32 [#allocation5], 4
      %s36 = int_to_ptr.vmem [resolvable:$true] %s35
      %41 = dma.hbm_to_vmem [thread:$0]  %s2, 4096, %s36, [#allocation6], 256, 256, 16
    $region13: #{tpu_custom_call.1} parent=1 // pred_fallthru
      _
    // Predicated region
    $region14: #{tpu_custom_call.1} parent=1 // pred_check
      _
    $region15: #{tpu_custom_call.1} parent=1 // pred_check_branch
      %43 = sbr.rel (0) target = $region17
    $region16: #{tpu_custom_call.1} parent=1 // pred_region
      %s45 = ssub.s32 4096, 4096
      %46 = vsyncadd [#allocation6], %s45
      %s47 = sshll.u32 [#allocation7], 4
      %s48 = int_to_ptr.vmem [resolvable:$true] %s47
      %53 = dma.hbm_to_vmem [thread:$0]  %s3, 4096, %s48, [#allocation6], 256, 256, 16
    $region17: #{tpu_custom_call.1} parent=1 // pred_fallthru
      _
    // Predicated region
    $region18: #{tpu_custom_call.1} parent=1 // pred_check
      _
    $region19: #{tpu_custom_call.1} parent=1 // pred_check_branch
      %55 = sbr.rel (0) target = $region21
    $region20: #{tpu_custom_call.1} parent=1 // pred_region
      _
    $region21: #{tpu_custom_call.1} parent=1 // pred_fallthru
      _
    // Predicated region
    $region22: #{tpu_custom_call.1} parent=1 // pred_check
      _
    $region23: #{tpu_custom_call.1} parent=1 // pred_check_branch
      %57 = sbr.rel (0) target = $region25
    $region24: #{tpu_custom_call.1} parent=1 // pred_region
      %s59 = ssub.s32 24576, 24576
      %60 = vsyncadd [#allocation9], %s59
      %s61 = sshll.u32 [#allocation8], 4
      %s62 = int_to_ptr.vmem [resolvable:$true] %s61
      %67 = dma.hbm_to_vmem [thread:$0]  %s5, 24576, %s62, [#allocation9], 256, 256, 16
    $region25: #{tpu_custom_call.1} parent=1 // pred_fallthru
      _
    // Predicated region
    $region26: #{tpu_custom_call.1} parent=1 // pred_check
      _
    $region27: #{tpu_custom_call.1} parent=1 // pred_check_branch
      %69 = sbr.rel (0) target = $region29
    $region28: #{tpu_custom_call.1} parent=1 // pred_region
      _
    $region29: #{tpu_custom_call.1} parent=1 // pred_fallthru
      _
    // Predicated region
    $region30: #{tpu_custom_call.1} parent=1 // pred_check
      _
    $region31: #{tpu_custom_call.1} parent=1 // pred_check_branch
      %71 = sbr.rel (0) target = $region33
    $region32: #{tpu_custom_call.1} parent=1 // pred_region
      %s73 = ssub.s32 4096, 4096
      %74 = vsyncadd [#allocation9], %s73
      %s75 = sshll.u32 [#allocation10], 4
      %s76 = int_to_ptr.vmem [resolvable:$true] %s75
      %81 = dma.hbm_to_vmem [thread:$0]  %s7, 4096, %s76, [#allocation9], 128, 128, 8
    $region33: #{tpu_custom_call.1} parent=1 // pred_fallthru
      _
    // Predicated region
    $region34: #{tpu_custom_call.1} parent=1 // pred_check
      _
    $region35: #{tpu_custom_call.1} parent=1 // pred_check_branch
      %83 = sbr.rel (0) target = $region37
    $region36: #{tpu_custom_call.1} parent=1 // pred_region
      _
    $region37: #{tpu_custom_call.1} parent=1 // pred_fallthru
      _
    // Predicated region
    $region38: #{tpu_custom_call.1} parent=1 // pred_check
      _
    $region39: #{tpu_custom_call.1} parent=1 // pred_check_branch
      %85 = sbr.rel (0) target = $region41
    $region40: #{tpu_custom_call.1} parent=1 // pred_region
      %86 = dma.done [#allocation3], 16
    $region41: #{tpu_custom_call.1} parent=1 // pred_fallthru
      _
    // Predicated region
    $region42: #{tpu_custom_call.1} parent=1 // pred_check
      _
    $region43: #{tpu_custom_call.1} parent=1 // pred_check_branch
      %88 = sbr.rel (0) target = $region45
    $region44: #{tpu_custom_call.1} parent=1 // pred_region
      %89 = dma.done [#allocation6], 4096
    $region45: #{tpu_custom_call.1} parent=1 // pred_fallthru
      _
    // Predicated region
    $region46: #{tpu_custom_call.1} parent=1 // pred_check
      _
    $region47: #{tpu_custom_call.1} parent=1 // pred_check_branch
      %91 = sbr.rel (0) target = $region49
    $region48: #{tpu_custom_call.1} parent=1 // pred_region
      %92 = dma.done [#allocation6], 4096
    $region49: #{tpu_custom_call.1} parent=1 // pred_fallthru
      _
    // Predicated region
    $region50: #{tpu_custom_call.1} parent=1 // pred_check
      _
    $region51: #{tpu_custom_call.1} parent=1 // pred_check_branch
      %94 = sbr.rel (0) target = $region53
    $region52: #{tpu_custom_call.1} parent=1 // pred_region
      %95 = dma.done [#allocation9], 24576
    $region53: #{tpu_custom_call.1} parent=1 // pred_fallthru
      _
    // Predicated region
    $region54: #{tpu_custom_call.1} parent=1 // pred_check
      _
    $region55: #{tpu_custom_call.1} parent=1 // pred_check_branch
      %97 = sbr.rel (0) target = $region57
    $region56: #{tpu_custom_call.1} parent=1 // pred_region
      %98 = dma.done [#allocation9], 4096
    $region57: #{tpu_custom_call.1} parent=1 // pred_fallthru
      _
    %v99 = vld [vmem:[#allocation2] sm:$0x1]
    %v100 = vld [vmem:[#allocation5] sm:$0xff]
    %v101 = vld [vmem:[#allocation5 + $0x8] sm:$0xff]
    %v102 = vld [vmem:[#allocation5 + $0x10] sm:$0xff]
    %v103 = vld [vmem:[#allocation5 + $0x18] sm:$0xff]
    %v104 = vld [vmem:[#allocation5 + $0x20] sm:$0xff]
    %v105 = vld [vmem:[#allocation5 + $0x28] sm:$0xff]
    %v106 = vld [vmem:[#allocation5 + $0x30] sm:$0xff]
    %v107 = vld [vmem:[#allocation5 + $0x38] sm:$0xff]
    %v108 = vld [vmem:[#allocation5 + $0x40] sm:$0xff]
    %v109 = vld [vmem:[#allocation5 + $0x48] sm:$0xff]
    %v110 = vld [vmem:[#allocation5 + $0x50] sm:$0xff]
    %v111 = vld [vmem:[#allocation5 + $0x58] sm:$0xff]
    %v112 = vld [vmem:[#allocation5 + $0x60] sm:$0xff]
    %v113 = vld [vmem:[#allocation5 + $0x68] sm:$0xff]
    %v114 = vld [vmem:[#allocation5 + $0x70] sm:$0xff]
    %v115 = vld [vmem:[#allocation5 + $0x78] sm:$0xff]
    %v116 = vld [vmem:[#allocation5 + $0x80] sm:$0xff]
    %v117 = vld [vmem:[#allocation5 + $0x88] sm:$0xff]
    %v118 = vld [vmem:[#allocation5 + $0x90] sm:$0xff]
    %v119 = vld [vmem:[#allocation5 + $0x98] sm:$0xff]
    %v120 = vld [vmem:[#allocation5 + $0xa0] sm:$0xff]
    %v121 = vld [vmem:[#allocation5 + $0xa8] sm:$0xff]
    %v122 = vld [vmem:[#allocation5 + $0xb0] sm:$0xff]
    %v123 = vld [vmem:[#allocation5 + $0xb8] sm:$0xff]
    %v124 = vld [vmem:[#allocation5 + $0xc0] sm:$0xff]
    %v125 = vld [vmem:[#allocation5 + $0xc8] sm:$0xff]
    %v126 = vld [vmem:[#allocation5 + $0xd0] sm:$0xff]
    %v127 = vld [vmem:[#allocation5 + $0xd8] sm:$0xff]
    %v128 = vld [vmem:[#allocation5 + $0xe0] sm:$0xff]
    %v129 = vld [vmem:[#allocation5 + $0xe8] sm:$0xff]
    %v130 = vld [vmem:[#allocation5 + $0xf0] sm:$0xff]
    %v131 = vld [vmem:[#allocation5 + $0xf8] sm:$0xff]
    %v132 = vld [vmem:[%s1] sm:$0x1]
    %v133 = vld [vmem:[#allocation7] sm:$0xff]
    %v134 = vld [vmem:[#allocation7 + $0x8] sm:$0xff]
    %v135 = vld [vmem:[#allocation7 + $0x10] sm:$0xff]
    %v136 = vld [vmem:[#allocation7 + $0x18] sm:$0xff]
    %v137 = vld [vmem:[#allocation7 + $0x20] sm:$0xff]
    %v138 = vld [vmem:[#allocation7 + $0x28] sm:$0xff]
    %v139 = vld [vmem:[#allocation7 + $0x30] sm:$0xff]
    %v140 = vld [vmem:[#allocation7 + $0x38] sm:$0xff]
    %v141 = vld [vmem:[#allocation7 + $0x40] sm:$0xff]
    %v142 = vld [vmem:[#allocation7 + $0x48] sm:$0xff]
    %v143 = vld [vmem:[#allocation7 + $0x50] sm:$0xff]
    %v144 = vld [vmem:[#allocation7 + $0x58] sm:$0xff]
    %v145 = vld [vmem:[#allocation7 + $0x60] sm:$0xff]
    %v146 = vld [vmem:[#allocation7 + $0x68] sm:$0xff]
    %v147 = vld [vmem:[#allocation7 + $0x70] sm:$0xff]
    %v148 = vld [vmem:[#allocation7 + $0x78] sm:$0xff]
    %v149 = vld [vmem:[#allocation7 + $0x80] sm:$0xff]
    %v150 = vld [vmem:[#allocation7 + $0x88] sm:$0xff]
    %v151 = vld [vmem:[#allocation7 + $0x90] sm:$0xff]
    %v152 = vld [vmem:[#allocation7 + $0x98] sm:$0xff]
    %v153 = vld [vmem:[#allocation7 + $0xa0] sm:$0xff]
    %v154 = vld [vmem:[#allocation7 + $0xa8] sm:$0xff]
    %v155 = vld [vmem:[#allocation7 + $0xb0] sm:$0xff]
    %v156 = vld [vmem:[#allocation7 + $0xb8] sm:$0xff]
    %v157 = vld [vmem:[#allocation7 + $0xc0] sm:$0xff]
    %v158 = vld [vmem:[#allocation7 + $0xc8] sm:$0xff]
    %v159 = vld [vmem:[#allocation7 + $0xd0] sm:$0xff]
    %v160 = vld [vmem:[#allocation7 + $0xd8] sm:$0xff]
    %v161 = vld [vmem:[#allocation7 + $0xe0] sm:$0xff]
    %v162 = vld [vmem:[#allocation7 + $0xe8] sm:$0xff]
    %v163 = vld [vmem:[#allocation7 + $0xf0] sm:$0xff]
    %v164 = vld [vmem:[#allocation7 + $0xf8] sm:$0xff]
    %165 = vmatprep.subr.mxu0 %v134
    %166 = vmatpush1.msra.mxu0 %v133
    %167 = vmatprep.subr.mxu0 %v136
    %168 = vmatpush1.msra.mxu0 %v135
    %169 = vmatprep.subr.mxu0 %v138
    %170 = vmatpush1.msra.mxu0 %v137
    %171 = vmatprep.subr.mxu0 %v140
    %172 = vmatpush1.msra.mxu0 %v139
    %173 = vmatprep.subr.mxu0 %v142
    %174 = vmatpush1.msra.mxu0 %v141
    %175 = vmatprep.subr.mxu0 %v144
    %176 = vmatpush1.msra.mxu0 %v143
    %177 = vmatprep.subr.mxu0 %v146
    %178 = vmatpush1.msra.mxu0 %v145
    %179 = vmatprep.subr.mxu0 %v148
    %180 = vmatpush1.msra.mxu0 %v147
    %181 = vmatprep.subr.mxu0 %v150
    %182 = vmatpush1.msra.mxu0 %v149
    %183 = vmatprep.subr.mxu0 %v152
    %184 = vmatpush1.msra.mxu0 %v151
    %185 = vmatprep.subr.mxu0 %v154
    %186 = vmatpush1.msra.mxu0 %v153
    %187 = vmatprep.subr.mxu0 %v156
    %188 = vmatpush1.msra.mxu0 %v155
    %189 = vmatprep.subr.mxu0 %v158
    %190 = vmatpush1.msra.mxu0 %v157
    %191 = vmatprep.subr.mxu0 %v160
    %192 = vmatpush1.msra.mxu0 %v159
    %193 = vmatprep.subr.mxu0 %v162
    %194 = vmatpush1.msra.mxu0 %v161
    %195 = vmatprep.subr.mxu0 %v164
    %196 = vmatpush1.msra.mxu0 %v163
    %197 = vmatprep.subr.mxu0 0.0
    %198 = vmatpush1.msra.mxu0 0.0
    %199 = vmatprep.subr.mxu0 0.0
    %200 = vmatpush1.msra.mxu0 0.0
    %201 = vmatprep.subr.mxu0 0.0
    %202 = vmatpush1.msra.mxu0 0.0
    %203 = vmatprep.subr.mxu0 0.0
    %204 = vmatpush1.msra.mxu0 0.0
    %205 = vmatprep.subr.mxu0 0.0
    %206 = vmatpush1.msra.mxu0 0.0
    %207 = vmatprep.subr.mxu0 0.0
    %208 = vmatpush1.msra.mxu0 0.0
    %209 = vmatprep.subr.mxu0 0.0
    %210 = vmatpush1.msra.mxu0 0.0
    %211 = vmatprep.subr.mxu0 0.0
    %212 = vmatpush1.msra.mxu0 0.0
    %213 = vmatprep.subr.mxu0 0.0
    %214 = vmatpush1.msra.mxu0 0.0
    %215 = vmatprep.subr.mxu0 0.0
    %216 = vmatpush1.msra.mxu0 0.0
    %217 = vmatprep.subr.mxu0 0.0
    %218 = vmatpush1.msra.mxu0 0.0
    %219 = vmatprep.subr.mxu0 0.0
    %220 = vmatpush1.msra.mxu0 0.0
    %221 = vmatprep.subr.mxu0 0.0
    %222 = vmatpush1.msra.mxu0 0.0
    %223 = vmatprep.subr.mxu0 0.0
    %224 = vmatpush1.msra.mxu0 0.0
    %225 = vmatprep.subr.mxu0 0.0
    %226 = vmatpush1.msra.mxu0 0.0
    %227 = vmatprep.subr.mxu0 0.0
    %228 = vmatpush1.msra.mxu0 0.0
    %229 = vmatprep.mubr.f32.mxu0 0.0
    %230 = vmatmul.mubr.f32.gmra.mrb[0].mxu0 %v132
    %v231 = vpop.f32.mrb[0].mxu0
    %v232 = vadd.f32 0.0, %v231
    %v233 = vpop.f32.mrb[0].mxu0
    %v234 = vadd.f32 0.0, %v233
    %235 = vdwg.mxu0
    %236 = vmatprep.subr.mxu0 %v101
    %237 = vmatpush1.msra.mxu0 %v100
    %238 = vmatprep.subr.mxu0 %v103
    %239 = vmatpush1.msra.mxu0 %v102
    %240 = vmatprep.subr.mxu0 %v105
    %241 = vmatpush1.msra.mxu0 %v104
    %242 = vmatprep.subr.mxu0 %v107
    %243 = vmatpush1.msra.mxu0 %v106
    %244 = vmatprep.subr.mxu0 %v109
    %245 = vmatpush1.msra.mxu0 %v108
    %246 = vmatprep.subr.mxu0 %v111
    %247 = vmatpush1.msra.mxu0 %v110
    %248 = vmatprep.subr.mxu0 %v113
    %249 = vmatpush1.msra.mxu0 %v112
    %250 = vmatprep.subr.mxu0 %v115
    %251 = vmatpush1.msra.mxu0 %v114
    %252 = vmatprep.subr.mxu0 %v117
    %253 = vmatpush1.msra.mxu0 %v116
    %254 = vmatprep.subr.mxu0 %v119
    %255 = vmatpush1.msra.mxu0 %v118
    %256 = vmatprep.subr.mxu0 %v121
    %257 = vmatpush1.msra.mxu0 %v120
    %258 = vmatprep.subr.mxu0 %v123
    %259 = vmatpush1.msra.mxu0 %v122
    %260 = vmatprep.subr.mxu0 %v125
    %261 = vmatpush1.msra.mxu0 %v124
    %262 = vmatprep.subr.mxu0 %v127
    %263 = vmatpush1.msra.mxu0 %v126
    %264 = vmatprep.subr.mxu0 %v129
    %265 = vmatpush1.msra.mxu0 %v128
    %266 = vmatprep.subr.mxu0 %v131
    %267 = vmatpush1.msra.mxu0 %v130
    %268 = vmatprep.subr.mxu0 0.0
    %269 = vmatpush1.msra.mxu0 0.0
    %270 = vmatprep.subr.mxu0 0.0
    %271 = vmatpush1.msra.mxu0 0.0
    %272 = vmatprep.subr.mxu0 0.0
    %273 = vmatpush1.msra.mxu0 0.0
    %274 = vmatprep.subr.mxu0 0.0
    %275 = vmatpush1.msra.mxu0 0.0
    %276 = vmatprep.subr.mxu0 0.0
    %277 = vmatpush1.msra.mxu0 0.0
    %278 = vmatprep.subr.mxu0 0.0
    %279 = vmatpush1.msra.mxu0 0.0
    %280 = vmatprep.subr.mxu0 0.0
    %281 = vmatpush1.msra.mxu0 0.0
    %282 = vmatprep.subr.mxu0 0.0
    %283 = vmatpush1.msra.mxu0 0.0
    %284 = vmatprep.subr.mxu0 0.0
    %285 = vmatpush1.msra.mxu0 0.0
    %286 = vmatprep.subr.mxu0 0.0
    %287 = vmatpush1.msra.mxu0 0.0
    %288 = vmatprep.subr.mxu0 0.0
    %289 = vmatpush1.msra.mxu0 0.0
    %290 = vmatprep.subr.mxu0 0.0
    %291 = vmatpush1.msra.mxu0 0.0
    %292 = vmatprep.subr.mxu0 0.0
    %293 = vmatpush1.msra.mxu0 0.0
    %294 = vmatprep.subr.mxu0 0.0
    %295 = vmatpush1.msra.mxu0 0.0
    %296 = vmatprep.subr.mxu0 0.0
    %297 = vmatpush1.msra.mxu0 0.0
    %298 = vmatprep.subr.mxu0 0.0
    %299 = vmatpush1.msra.mxu0 0.0
    %300 = vmatprep.mubr.f32.mxu0 0.0
    %301 = vmatmul.mubr.f32.gmra.mrb[0].mxu0 %v99
    %v302 = vpop.f32.mrb[0].mxu0
    %v303 = vadd.f32 %v232, %v302
    %v304 = vpop.f32.mrb[0].mxu0
    %v305 = vadd.f32 %v234, %v304
    %306 = vdwg.mxu0
    %v307 = vld [vmem:[%s4] sm:$0x3]
    %v309 = vlaneseq
    %v310 = vshrl.u32 %v309, 7
    %v311 = vsub.s32 0, %v310
    %v312 = vrot.slane %v307, %v311
    %v313 = vlaneseq
    %v314 = vshrl.u32 %v313, 7
    %v315 = vsub.s32 1, %v314
    %v316 = vrot.slane %v307, %v315
    %v319 = vadd.f32 %v303, %v312
    %v320 = vadd.f32 %v305, %v316
    %vm321 = vcmp.gt.f32.partialorder %v319, 0.0
    %vm322 = vcmp.gt.f32.partialorder %v320, 0.0
    %v323 = vmul.f32 %v319, 0.2
    %v324 = vmul.f32 %v320, 0.2
    %v325 = vsel %vm321, %v319, %v323
    %v326 = vsel %vm322, %v320, %v324
    %v327 = vld [vmem:[#allocation8] sm:$0xff]
    %v328 = vld [vmem:[#allocation8 + $0x8] sm:$0xff]
    %v329 = vld [vmem:[#allocation8 + $0x10] sm:$0xff]
    %v330 = vld [vmem:[#allocation8 + $0x18] sm:$0xff]
    %v331 = vld [vmem:[#allocation8 + $0x20] sm:$0xff]
    %v332 = vld [vmem:[#allocation8 + $0x28] sm:$0xff]
    %v333 = vld [vmem:[#allocation8 + $0x30] sm:$0xff]
    %v334 = vld [vmem:[#allocation8 + $0x38] sm:$0xff]
    %v335 = vld [vmem:[#allocation8 + $0x40] sm:$0xff]
    %v336 = vld [vmem:[#allocation8 + $0x48] sm:$0xff]
    %v337 = vld [vmem:[#allocation8 + $0x50] sm:$0xff]
    %v338 = vld [vmem:[#allocation8 + $0x58] sm:$0xff]
    %v339 = vld [vmem:[#allocation8 + $0x60] sm:$0xff]
    %v340 = vld [vmem:[#allocation8 + $0x68] sm:$0xff]
    %v341 = vld [vmem:[#allocation8 + $0x70] sm:$0xff]
    %v342 = vld [vmem:[#allocation8 + $0x78] sm:$0xff]
    %v343 = vld [vmem:[#allocation8 + $0x80] sm:$0xff]
    %v344 = vld [vmem:[#allocation8 + $0x88] sm:$0xff]
    %v345 = vld [vmem:[#allocation8 + $0x90] sm:$0xff]
    %v346 = vld [vmem:[#allocation8 + $0x98] sm:$0xff]
    %v347 = vld [vmem:[#allocation8 + $0xa0] sm:$0xff]
    %v348 = vld [vmem:[#allocation8 + $0xa8] sm:$0xff]
    %v349 = vld [vmem:[#allocation8 + $0xb0] sm:$0xff]
    %v350 = vld [vmem:[#allocation8 + $0xb8] sm:$0xff]
    %v351 = vld [vmem:[#allocation8 + $0xc0] sm:$0xff]
    %v352 = vld [vmem:[#allocation8 + $0xc8] sm:$0xff]
    %v353 = vld [vmem:[#allocation8 + $0xd0] sm:$0xff]
    %v354 = vld [vmem:[#allocation8 + $0xd8] sm:$0xff]
    %v355 = vld [vmem:[#allocation8 + $0xe0] sm:$0xff]
    %v356 = vld [vmem:[#allocation8 + $0xe8] sm:$0xff]
    %v357 = vld [vmem:[#allocation8 + $0xf0] sm:$0xff]
    %v358 = vld [vmem:[#allocation8 + $0xf8] sm:$0xff]
    %v359 = vld [vmem:[#allocation8 + $0x100] sm:$0xff]
    %v360 = vld [vmem:[#allocation8 + $0x108] sm:$0xff]
    %v361 = vld [vmem:[#allocation8 + $0x110] sm:$0xff]
    %v362 = vld [vmem:[#allocation8 + $0x118] sm:$0xff]
    %v363 = vld [vmem:[#allocation8 + $0x120] sm:$0xff]
    %v364 = vld [vmem:[#allocation8 + $0x128] sm:$0xff]
    %v365 = vld [vmem:[#allocation8 + $0x130] sm:$0xff]
    %v366 = vld [vmem:[#allocation8 + $0x138] sm:$0xff]
    %v367 = vld [vmem:[#allocation8 + $0x140] sm:$0xff]
    %v368 = vld [vmem:[#allocation8 + $0x148] sm:$0xff]
    %v369 = vld [vmem:[#allocation8 + $0x150] sm:$0xff]
    %v370 = vld [vmem:[#allocation8 + $0x158] sm:$0xff]
    %v371 = vld [vmem:[#allocation8 + $0x160] sm:$0xff]
    %v372 = vld [vmem:[#allocation8 + $0x168] sm:$0xff]
    %v373 = vld [vmem:[#allocation8 + $0x170] sm:$0xff]
    %v374 = vld [vmem:[#allocation8 + $0x178] sm:$0xff]
    %v375 = vld [vmem:[#allocation8 + $0x180] sm:$0xff]
    %v376 = vld [vmem:[#allocation8 + $0x188] sm:$0xff]
    %v377 = vld [vmem:[#allocation8 + $0x190] sm:$0xff]
    %v378 = vld [vmem:[#allocation8 + $0x198] sm:$0xff]
    %v379 = vld [vmem:[#allocation8 + $0x1a0] sm:$0xff]
    %v380 = vld [vmem:[#allocation8 + $0x1a8] sm:$0xff]
    %v381 = vld [vmem:[#allocation8 + $0x1b0] sm:$0xff]
    %v382 = vld [vmem:[#allocation8 + $0x1b8] sm:$0xff]
    %v383 = vld [vmem:[#allocation8 + $0x1c0] sm:$0xff]
    %v384 = vld [vmem:[#allocation8 + $0x1c8] sm:$0xff]
    %v385 = vld [vmem:[#allocation8 + $0x1d0] sm:$0xff]
    %v386 = vld [vmem:[#allocation8 + $0x1d8] sm:$0xff]
    %v387 = vld [vmem:[#allocation8 + $0x1e0] sm:$0xff]
    %v388 = vld [vmem:[#allocation8 + $0x1e8] sm:$0xff]
    %v389 = vld [vmem:[#allocation8 + $0x1f0] sm:$0xff]
    %v390 = vld [vmem:[#allocation8 + $0x1f8] sm:$0xff]
    %v391 = vld [vmem:[%s6] sm:$0x3]
    %v393 = vlaneseq
    %v394 = vshrl.u32 %v393, 7
    %v395 = vsub.s32 0, %v394
    %v396 = vrot.slane %v391, %v395
    %v397 = vlaneseq
    %v398 = vshrl.u32 %v397, 7
    %v399 = vsub.s32 1, %v398
    %v400 = vrot.slane %v391, %v399
    %403 = vmatprep.subr.mxu0 %v328
    %404 = vmatpush1.msra.mxu0 %v327
    %405 = vmatprep.subr.mxu0 %v330
    %406 = vmatpush1.msra.mxu0 %v329
    %407 = vmatprep.subr.mxu0 %v332
    %408 = vmatpush1.msra.mxu0 %v331
    %409 = vmatprep.subr.mxu0 %v334
    %410 = vmatpush1.msra.mxu0 %v333
    %411 = vmatprep.subr.mxu0 %v336
    %412 = vmatpush1.msra.mxu0 %v335
    %413 = vmatprep.subr.mxu0 %v338
    %414 = vmatpush1.msra.mxu0 %v337
    %415 = vmatprep.subr.mxu0 %v340
    %416 = vmatpush1.msra.mxu0 %v339
    %417 = vmatprep.subr.mxu0 %v342
    %418 = vmatpush1.msra.mxu0 %v341
    %419 = vmatprep.subr.mxu0 %v344
    %420 = vmatpush1.msra.mxu0 %v343
    %421 = vmatprep.subr.mxu0 %v346
    %422 = vmatpush1.msra.mxu0 %v345
    %423 = vmatprep.subr.mxu0 %v348
    %424 = vmatpush1.msra.mxu0 %v347
    %425 = vmatprep.subr.mxu0 %v350
    %426 = vmatpush1.msra.mxu0 %v349
    %427 = vmatprep.subr.mxu0 %v352
    %428 = vmatpush1.msra.mxu0 %v351
    %429 = vmatprep.subr.mxu0 %v354
    %430 = vmatpush1.msra.mxu0 %v353
    %431 = vmatprep.subr.mxu0 %v356
    %432 = vmatpush1.msra.mxu0 %v355
    %433 = vmatprep.subr.mxu0 %v358
    %434 = vmatpush1.msra.mxu0 %v357
    %435 = vmatprep.subr.mxu0 %v360
    %436 = vmatpush1.msra.mxu0 %v359
    %437 = vmatprep.subr.mxu0 %v362
    %438 = vmatpush1.msra.mxu0 %v361
    %439 = vmatprep.subr.mxu0 %v364
    %440 = vmatpush1.msra.mxu0 %v363
    %441 = vmatprep.subr.mxu0 %v366
    %442 = vmatpush1.msra.mxu0 %v365
    %443 = vmatprep.subr.mxu0 %v368
    %444 = vmatpush1.msra.mxu0 %v367
    %445 = vmatprep.subr.mxu0 %v370
    %446 = vmatpush1.msra.mxu0 %v369
    %447 = vmatprep.subr.mxu0 %v372
    %448 = vmatpush1.msra.mxu0 %v371
    %449 = vmatprep.subr.mxu0 %v374
    %450 = vmatpush1.msra.mxu0 %v373
    %451 = vmatprep.subr.mxu0 %v376
    %452 = vmatpush1.msra.mxu0 %v375
    %453 = vmatprep.subr.mxu0 %v378
    %454 = vmatpush1.msra.mxu0 %v377
    %455 = vmatprep.subr.mxu0 %v380
    %456 = vmatpush1.msra.mxu0 %v379
    %457 = vmatprep.subr.mxu0 %v382
    %458 = vmatpush1.msra.mxu0 %v381
    %459 = vmatprep.subr.mxu0 %v384
    %460 = vmatpush1.msra.mxu0 %v383
    %461 = vmatprep.subr.mxu0 %v386
    %462 = vmatpush1.msra.mxu0 %v385
    %463 = vmatprep.subr.mxu0 %v388
    %464 = vmatpush1.msra.mxu0 %v387
    %465 = vmatprep.subr.mxu0 %v390
    %466 = vmatpush1.msra.mxu0 %v389
    %467 = vmatprep.mubr.f32.mxu0 %v326
    %468 = vmatmul.mubr.f32.gmra.mrb[0].mxu0 %v325
    %v469 = vpop.f32.mrb[0].mxu0
    %v470 = vadd.f32 %v396, %v469
    %v471 = vpop.f32.mrb[0].mxu0
    %v472 = vadd.f32 %v400, %v471
    %473 = vdwg.mxu0
    %vm474 = vcmp.gt.f32.partialorder %v470, 0.0
    %vm475 = vcmp.gt.f32.partialorder %v472, 0.0
    %v476 = vmul.f32 %v470, 0.2
    %v477 = vmul.f32 %v472, 0.2
    %v478 = vsel %vm474, %v470, %v476
    %v479 = vsel %vm475, %v472, %v477
    %s480 = scalar_lea.vmem [#allocation8], 512
    %v481 = vld [vmem:[%s480] sm:$0xff]
    %v482 = vld [vmem:[%s480 + $0x8] sm:$0xff]
    %v483 = vld [vmem:[%s480 + $0x10] sm:$0xff]
    %v484 = vld [vmem:[%s480 + $0x18] sm:$0xff]
    %v485 = vld [vmem:[%s480 + $0x20] sm:$0xff]
    %v486 = vld [vmem:[%s480 + $0x28] sm:$0xff]
    %v487 = vld [vmem:[%s480 + $0x30] sm:$0xff]
    %v488 = vld [vmem:[%s480 + $0x38] sm:$0xff]
    %v489 = vld [vmem:[%s480 + $0x40] sm:$0xff]
    %v490 = vld [vmem:[%s480 + $0x48] sm:$0xff]
    %v491 = vld [vmem:[%s480 + $0x50] sm:$0xff]
    %v492 = vld [vmem:[%s480 + $0x58] sm:$0xff]
    %v493 = vld [vmem:[%s480 + $0x60] sm:$0xff]
    %v494 = vld [vmem:[%s480 + $0x68] sm:$0xff]
    %v495 = vld [vmem:[%s480 + $0x70] sm:$0xff]
    %v496 = vld [vmem:[%s480 + $0x78] sm:$0xff]
    %v497 = vld [vmem:[%s480 + $0x80] sm:$0xff]
    %v498 = vld [vmem:[%s480 + $0x88] sm:$0xff]
    %v499 = vld [vmem:[%s480 + $0x90] sm:$0xff]
    %v500 = vld [vmem:[%s480 + $0x98] sm:$0xff]
    %v501 = vld [vmem:[%s480 + $0xa0] sm:$0xff]
    %v502 = vld [vmem:[%s480 + $0xa8] sm:$0xff]
    %v503 = vld [vmem:[%s480 + $0xb0] sm:$0xff]
    %v504 = vld [vmem:[%s480 + $0xb8] sm:$0xff]
    %v505 = vld [vmem:[%s480 + $0xc0] sm:$0xff]
    %v506 = vld [vmem:[%s480 + $0xc8] sm:$0xff]
    %v507 = vld [vmem:[%s480 + $0xd0] sm:$0xff]
    %v508 = vld [vmem:[%s480 + $0xd8] sm:$0xff]
    %v509 = vld [vmem:[%s480 + $0xe0] sm:$0xff]
    %v510 = vld [vmem:[%s480 + $0xe8] sm:$0xff]
    %v511 = vld [vmem:[%s480 + $0xf0] sm:$0xff]
    %v512 = vld [vmem:[%s480 + $0xf8] sm:$0xff]
    %v513 = vld [vmem:[%s480 + $0x100] sm:$0xff]
    %v514 = vld [vmem:[%s480 + $0x108] sm:$0xff]
    %v515 = vld [vmem:[%s480 + $0x110] sm:$0xff]
    %v516 = vld [vmem:[%s480 + $0x118] sm:$0xff]
    %v517 = vld [vmem:[%s480 + $0x120] sm:$0xff]
    %v518 = vld [vmem:[%s480 + $0x128] sm:$0xff]
    %v519 = vld [vmem:[%s480 + $0x130] sm:$0xff]
    %v520 = vld [vmem:[%s480 + $0x138] sm:$0xff]
    %v521 = vld [vmem:[%s480 + $0x140] sm:$0xff]
    %v522 = vld [vmem:[%s480 + $0x148] sm:$0xff]
    %v523 = vld [vmem:[%s480 + $0x150] sm:$0xff]
    %v524 = vld [vmem:[%s480 + $0x158] sm:$0xff]
    %v525 = vld [vmem:[%s480 + $0x160] sm:$0xff]
    %v526 = vld [vmem:[%s480 + $0x168] sm:$0xff]
    %v527 = vld [vmem:[%s480 + $0x170] sm:$0xff]
    %v528 = vld [vmem:[%s480 + $0x178] sm:$0xff]
    %v529 = vld [vmem:[%s480 + $0x180] sm:$0xff]
    %v530 = vld [vmem:[%s480 + $0x188] sm:$0xff]
    %v531 = vld [vmem:[%s480 + $0x190] sm:$0xff]
    %v532 = vld [vmem:[%s480 + $0x198] sm:$0xff]
    %v533 = vld [vmem:[%s480 + $0x1a0] sm:$0xff]
    %v534 = vld [vmem:[%s480 + $0x1a8] sm:$0xff]
    %v535 = vld [vmem:[%s480 + $0x1b0] sm:$0xff]
    %v536 = vld [vmem:[%s480 + $0x1b8] sm:$0xff]
    %v537 = vld [vmem:[%s480 + $0x1c0] sm:$0xff]
    %v538 = vld [vmem:[%s480 + $0x1c8] sm:$0xff]
    %v539 = vld [vmem:[%s480 + $0x1d0] sm:$0xff]
    %v540 = vld [vmem:[%s480 + $0x1d8] sm:$0xff]
    %v541 = vld [vmem:[%s480 + $0x1e0] sm:$0xff]
    %v542 = vld [vmem:[%s480 + $0x1e8] sm:$0xff]
    %v543 = vld [vmem:[%s480 + $0x1f0] sm:$0xff]
    %v544 = vld [vmem:[%s480 + $0x1f8] sm:$0xff]
    %s545 = scalar_lea.vmem %s6, 2
    %v546 = vld [vmem:[%s545] sm:$0x3]
    %v548 = vlaneseq
    %v549 = vshrl.u32 %v548, 7
    %v550 = vsub.s32 0, %v549
    %v551 = vrot.slane %v546, %v550
    %v552 = vlaneseq
    %v553 = vshrl.u32 %v552, 7
    %v554 = vsub.s32 1, %v553
    %v555 = vrot.slane %v546, %v554
    %558 = vmatprep.subr.mxu0 %v482
    %559 = vmatpush1.msra.mxu0 %v481
    %560 = vmatprep.subr.mxu0 %v484
    %561 = vmatpush1.msra.mxu0 %v483
    %562 = vmatprep.subr.mxu0 %v486
    %563 = vmatpush1.msra.mxu0 %v485
    %564 = vmatprep.subr.mxu0 %v488
    %565 = vmatpush1.msra.mxu0 %v487
    %566 = vmatprep.subr.mxu0 %v490
    %567 = vmatpush1.msra.mxu0 %v489
    %568 = vmatprep.subr.mxu0 %v492
    %569 = vmatpush1.msra.mxu0 %v491
    %570 = vmatprep.subr.mxu0 %v494
    %571 = vmatpush1.msra.mxu0 %v493
    %572 = vmatprep.subr.mxu0 %v496
    %573 = vmatpush1.msra.mxu0 %v495
    %574 = vmatprep.subr.mxu0 %v498
    %575 = vmatpush1.msra.mxu0 %v497
    %576 = vmatprep.subr.mxu0 %v500
    %577 = vmatpush1.msra.mxu0 %v499
    %578 = vmatprep.subr.mxu0 %v502
    %579 = vmatpush1.msra.mxu0 %v501
    %580 = vmatprep.subr.mxu0 %v504
    %581 = vmatpush1.msra.mxu0 %v503
    %582 = vmatprep.subr.mxu0 %v506
    %583 = vmatpush1.msra.mxu0 %v505
    %584 = vmatprep.subr.mxu0 %v508
    %585 = vmatpush1.msra.mxu0 %v507
    %586 = vmatprep.subr.mxu0 %v510
    %587 = vmatpush1.msra.mxu0 %v509
    %588 = vmatprep.subr.mxu0 %v512
    %589 = vmatpush1.msra.mxu0 %v511
    %590 = vmatprep.subr.mxu0 %v514
    %591 = vmatpush1.msra.mxu0 %v513
    %592 = vmatprep.subr.mxu0 %v516
    %593 = vmatpush1.msra.mxu0 %v515
    %594 = vmatprep.subr.mxu0 %v518
    %595 = vmatpush1.msra.mxu0 %v517
    %596 = vmatprep.subr.mxu0 %v520
    %597 = vmatpush1.msra.mxu0 %v519
    %598 = vmatprep.subr.mxu0 %v522
    %599 = vmatpush1.msra.mxu0 %v521
    %600 = vmatprep.subr.mxu0 %v524
    %601 = vmatpush1.msra.mxu0 %v523
    %602 = vmatprep.subr.mxu0 %v526
    %603 = vmatpush1.msra.mxu0 %v525
    %604 = vmatprep.subr.mxu0 %v528
    %605 = vmatpush1.msra.mxu0 %v527
    %606 = vmatprep.subr.mxu0 %v530
    %607 = vmatpush1.msra.mxu0 %v529
    %608 = vmatprep.subr.mxu0 %v532
    %609 = vmatpush1.msra.mxu0 %v531
    %610 = vmatprep.subr.mxu0 %v534
    %611 = vmatpush1.msra.mxu0 %v533
    %612 = vmatprep.subr.mxu0 %v536
    %613 = vmatpush1.msra.mxu0 %v535
    %614 = vmatprep.subr.mxu0 %v538
    %615 = vmatpush1.msra.mxu0 %v537
    %616 = vmatprep.subr.mxu0 %v540
    %617 = vmatpush1.msra.mxu0 %v539
    %618 = vmatprep.subr.mxu0 %v542
    %619 = vmatpush1.msra.mxu0 %v541
    %620 = vmatprep.subr.mxu0 %v544
    %621 = vmatpush1.msra.mxu0 %v543
    %622 = vmatprep.mubr.f32.mxu0 %v479
    %623 = vmatmul.mubr.f32.gmra.mrb[0].mxu0 %v478
    %v624 = vpop.f32.mrb[0].mxu0
    %v625 = vadd.f32 %v551, %v624
    %v626 = vpop.f32.mrb[0].mxu0
    %v627 = vadd.f32 %v555, %v626
    %628 = vdwg.mxu0
    %vm629 = vcmp.gt.f32.partialorder %v625, 0.0
    %vm630 = vcmp.gt.f32.partialorder %v627, 0.0
    %v631 = vmul.f32 %v625, 0.2
    %v632 = vmul.f32 %v627, 0.2
    %v633 = vsel %vm629, %v625, %v631
    %v634 = vsel %vm630, %v627, %v632
    %s635 = scalar_lea.vmem [#allocation8], 1024
    %v636 = vld [vmem:[%s635] sm:$0xff]
    %v637 = vld [vmem:[%s635 + $0x8] sm:$0xff]
    %v638 = vld [vmem:[%s635 + $0x10] sm:$0xff]
    %v639 = vld [vmem:[%s635 + $0x18] sm:$0xff]
    %v640 = vld [vmem:[%s635 + $0x20] sm:$0xff]
    %v641 = vld [vmem:[%s635 + $0x28] sm:$0xff]
    %v642 = vld [vmem:[%s635 + $0x30] sm:$0xff]
    %v643 = vld [vmem:[%s635 + $0x38] sm:$0xff]
    %v644 = vld [vmem:[%s635 + $0x40] sm:$0xff]
    %v645 = vld [vmem:[%s635 + $0x48] sm:$0xff]
    %v646 = vld [vmem:[%s635 + $0x50] sm:$0xff]
    %v647 = vld [vmem:[%s635 + $0x58] sm:$0xff]
    %v648 = vld [vmem:[%s635 + $0x60] sm:$0xff]
    %v649 = vld [vmem:[%s635 + $0x68] sm:$0xff]
    %v650 = vld [vmem:[%s635 + $0x70] sm:$0xff]
    %v651 = vld [vmem:[%s635 + $0x78] sm:$0xff]
    %v652 = vld [vmem:[%s635 + $0x80] sm:$0xff]
    %v653 = vld [vmem:[%s635 + $0x88] sm:$0xff]
    %v654 = vld [vmem:[%s635 + $0x90] sm:$0xff]
    %v655 = vld [vmem:[%s635 + $0x98] sm:$0xff]
    %v656 = vld [vmem:[%s635 + $0xa0] sm:$0xff]
    %v657 = vld [vmem:[%s635 + $0xa8] sm:$0xff]
    %v658 = vld [vmem:[%s635 + $0xb0] sm:$0xff]
    %v659 = vld [vmem:[%s635 + $0xb8] sm:$0xff]
    %v660 = vld [vmem:[%s635 + $0xc0] sm:$0xff]
    %v661 = vld [vmem:[%s635 + $0xc8] sm:$0xff]
    %v662 = vld [vmem:[%s635 + $0xd0] sm:$0xff]
    %v663 = vld [vmem:[%s635 + $0xd8] sm:$0xff]
    %v664 = vld [vmem:[%s635 + $0xe0] sm:$0xff]
    %v665 = vld [vmem:[%s635 + $0xe8] sm:$0xff]
    %v666 = vld [vmem:[%s635 + $0xf0] sm:$0xff]
    %v667 = vld [vmem:[%s635 + $0xf8] sm:$0xff]
    %v668 = vld [vmem:[%s635 + $0x100] sm:$0xff]
    %v669 = vld [vmem:[%s635 + $0x108] sm:$0xff]
    %v670 = vld [vmem:[%s635 + $0x110] sm:$0xff]
    %v671 = vld [vmem:[%s635 + $0x118] sm:$0xff]
    %v672 = vld [vmem:[%s635 + $0x120] sm:$0xff]
    %v673 = vld [vmem:[%s635 + $0x128] sm:$0xff]
    %v674 = vld [vmem:[%s635 + $0x130] sm:$0xff]
    %v675 = vld [vmem:[%s635 + $0x138] sm:$0xff]
    %v676 = vld [vmem:[%s635 + $0x140] sm:$0xff]
    %v677 = vld [vmem:[%s635 + $0x148] sm:$0xff]
    %v678 = vld [vmem:[%s635 + $0x150] sm:$0xff]
    %v679 = vld [vmem:[%s635 + $0x158] sm:$0xff]
    %v680 = vld [vmem:[%s635 + $0x160] sm:$0xff]
    %v681 = vld [vmem:[%s635 + $0x168] sm:$0xff]
    %v682 = vld [vmem:[%s635 + $0x170] sm:$0xff]
    %v683 = vld [vmem:[%s635 + $0x178] sm:$0xff]
    %v684 = vld [vmem:[%s635 + $0x180] sm:$0xff]
    %v685 = vld [vmem:[%s635 + $0x188] sm:$0xff]
    %v686 = vld [vmem:[%s635 + $0x190] sm:$0xff]
    %v687 = vld [vmem:[%s635 + $0x198] sm:$0xff]
    %v688 = vld [vmem:[%s635 + $0x1a0] sm:$0xff]
    %v689 = vld [vmem:[%s635 + $0x1a8] sm:$0xff]
    %v690 = vld [vmem:[%s635 + $0x1b0] sm:$0xff]
    %v691 = vld [vmem:[%s635 + $0x1b8] sm:$0xff]
    %v692 = vld [vmem:[%s635 + $0x1c0] sm:$0xff]
    %v693 = vld [vmem:[%s635 + $0x1c8] sm:$0xff]
    %v694 = vld [vmem:[%s635 + $0x1d0] sm:$0xff]
    %v695 = vld [vmem:[%s635 + $0x1d8] sm:$0xff]
    %v696 = vld [vmem:[%s635 + $0x1e0] sm:$0xff]
    %v697 = vld [vmem:[%s635 + $0x1e8] sm:$0xff]
    %v698 = vld [vmem:[%s635 + $0x1f0] sm:$0xff]
    %v699 = vld [vmem:[%s635 + $0x1f8] sm:$0xff]
    %s700 = scalar_lea.vmem %s6, 4
    %v701 = vld [vmem:[%s700] sm:$0x3]
    %v703 = vlaneseq
    %v704 = vshrl.u32 %v703, 7
    %v705 = vsub.s32 0, %v704
    %v706 = vrot.slane %v701, %v705
    %v707 = vlaneseq
    %v708 = vshrl.u32 %v707, 7
    %v709 = vsub.s32 1, %v708
    %v710 = vrot.slane %v701, %v709
    %713 = vmatprep.subr.mxu0 %v637
    %714 = vmatpush1.msra.mxu0 %v636
    %715 = vmatprep.subr.mxu0 %v639
    %716 = vmatpush1.msra.mxu0 %v638
    %717 = vmatprep.subr.mxu0 %v641
    %718 = vmatpush1.msra.mxu0 %v640
    %719 = vmatprep.subr.mxu0 %v643
    %720 = vmatpush1.msra.mxu0 %v642
    %721 = vmatprep.subr.mxu0 %v645
    %722 = vmatpush1.msra.mxu0 %v644
    %723 = vmatprep.subr.mxu0 %v647
    %724 = vmatpush1.msra.mxu0 %v646
    %725 = vmatprep.subr.mxu0 %v649
    %726 = vmatpush1.msra.mxu0 %v648
    %727 = vmatprep.subr.mxu0 %v651
    %728 = vmatpush1.msra.mxu0 %v650
    %729 = vmatprep.subr.mxu0 %v653
    %730 = vmatpush1.msra.mxu0 %v652
    %731 = vmatprep.subr.mxu0 %v655
    %732 = vmatpush1.msra.mxu0 %v654
    %733 = vmatprep.subr.mxu0 %v657
    %734 = vmatpush1.msra.mxu0 %v656
    %735 = vmatprep.subr.mxu0 %v659
    %736 = vmatpush1.msra.mxu0 %v658
    %737 = vmatprep.subr.mxu0 %v661
    %738 = vmatpush1.msra.mxu0 %v660
    %739 = vmatprep.subr.mxu0 %v663
    %740 = vmatpush1.msra.mxu0 %v662
    %741 = vmatprep.subr.mxu0 %v665
    %742 = vmatpush1.msra.mxu0 %v664
    %743 = vmatprep.subr.mxu0 %v667
    %744 = vmatpush1.msra.mxu0 %v666
    %745 = vmatprep.subr.mxu0 %v669
    %746 = vmatpush1.msra.mxu0 %v668
    %747 = vmatprep.subr.mxu0 %v671
    %748 = vmatpush1.msra.mxu0 %v670
    %749 = vmatprep.subr.mxu0 %v673
    %750 = vmatpush1.msra.mxu0 %v672
    %751 = vmatprep.subr.mxu0 %v675
    %752 = vmatpush1.msra.mxu0 %v674
    %753 = vmatprep.subr.mxu0 %v677
    %754 = vmatpush1.msra.mxu0 %v676
    %755 = vmatprep.subr.mxu0 %v679
    %756 = vmatpush1.msra.mxu0 %v678
    %757 = vmatprep.subr.mxu0 %v681
    %758 = vmatpush1.msra.mxu0 %v680
    %759 = vmatprep.subr.mxu0 %v683
    %760 = vmatpush1.msra.mxu0 %v682
    %761 = vmatprep.subr.mxu0 %v685
    %762 = vmatpush1.msra.mxu0 %v684
    %763 = vmatprep.subr.mxu0 %v687
    %764 = vmatpush1.msra.mxu0 %v686
    %765 = vmatprep.subr.mxu0 %v689
    %766 = vmatpush1.msra.mxu0 %v688
    %767 = vmatprep.subr.mxu0 %v691
    %768 = vmatpush1.msra.mxu0 %v690
    %769 = vmatprep.subr.mxu0 %v693
    %770 = vmatpush1.msra.mxu0 %v692
    %771 = vmatprep.subr.mxu0 %v695
    %772 = vmatpush1.msra.mxu0 %v694
    %773 = vmatprep.subr.mxu0 %v697
    %774 = vmatpush1.msra.mxu0 %v696
    %775 = vmatprep.subr.mxu0 %v699
    %776 = vmatpush1.msra.mxu0 %v698
    %777 = vmatprep.mubr.f32.mxu0 %v634
    %778 = vmatmul.mubr.f32.gmra.mrb[0].mxu0 %v633
    %v779 = vpop.f32.mrb[0].mxu0
    %v780 = vadd.f32 %v706, %v779
    %v781 = vpop.f32.mrb[0].mxu0
    %v782 = vadd.f32 %v710, %v781
    %783 = vdwg.mxu0
    %vm784 = vcmp.gt.f32.partialorder %v780, 0.0
    %vm785 = vcmp.gt.f32.partialorder %v782, 0.0
    %v786 = vmul.f32 %v780, 0.2
    %v787 = vmul.f32 %v782, 0.2
    %v788 = vsel %vm784, %v780, %v786
    %v789 = vsel %vm785, %v782, %v787
    %v790 = vld [vmem:[#allocation10] sm:$0xff]
    %v791 = vld [vmem:[#allocation10 + $0x8] sm:$0xff]
    %v792 = vld [vmem:[#allocation10 + $0x10] sm:$0xff]
    %v793 = vld [vmem:[#allocation10 + $0x18] sm:$0xff]
    %v794 = vld [vmem:[#allocation10 + $0x20] sm:$0xff]
    %v795 = vld [vmem:[#allocation10 + $0x28] sm:$0xff]
    %v796 = vld [vmem:[#allocation10 + $0x30] sm:$0xff]
    %v797 = vld [vmem:[#allocation10 + $0x38] sm:$0xff]
    %v798 = vld [vmem:[#allocation10 + $0x40] sm:$0xff]
    %v799 = vld [vmem:[#allocation10 + $0x48] sm:$0xff]
    %v800 = vld [vmem:[#allocation10 + $0x50] sm:$0xff]
    %v801 = vld [vmem:[#allocation10 + $0x58] sm:$0xff]
    %v802 = vld [vmem:[#allocation10 + $0x60] sm:$0xff]
    %v803 = vld [vmem:[#allocation10 + $0x68] sm:$0xff]
    %v804 = vld [vmem:[#allocation10 + $0x70] sm:$0xff]
    %v805 = vld [vmem:[#allocation10 + $0x78] sm:$0xff]
    %v806 = vld [vmem:[#allocation10 + $0x80] sm:$0xff]
    %v807 = vld [vmem:[#allocation10 + $0x88] sm:$0xff]
    %v808 = vld [vmem:[#allocation10 + $0x90] sm:$0xff]
    %v809 = vld [vmem:[#allocation10 + $0x98] sm:$0xff]
    %v810 = vld [vmem:[#allocation10 + $0xa0] sm:$0xff]
    %v811 = vld [vmem:[#allocation10 + $0xa8] sm:$0xff]
    %v812 = vld [vmem:[#allocation10 + $0xb0] sm:$0xff]
    %v813 = vld [vmem:[#allocation10 + $0xb8] sm:$0xff]
    %v814 = vld [vmem:[#allocation10 + $0xc0] sm:$0xff]
    %v815 = vld [vmem:[#allocation10 + $0xc8] sm:$0xff]
    %v816 = vld [vmem:[#allocation10 + $0xd0] sm:$0xff]
    %v817 = vld [vmem:[#allocation10 + $0xd8] sm:$0xff]
    %v818 = vld [vmem:[#allocation10 + $0xe0] sm:$0xff]
    %v819 = vld [vmem:[#allocation10 + $0xe8] sm:$0xff]
    %v820 = vld [vmem:[#allocation10 + $0xf0] sm:$0xff]
    %v821 = vld [vmem:[#allocation10 + $0xf8] sm:$0xff]
    %v822 = vld [vmem:[%s8] sm:$0x1]
    %823 = vmatprep.subr.mxu0 0.0
    %824 = vmatpush1.msra.mxu0 %v790
    %825 = vmatprep.subr.mxu0 0.0
    %826 = vmatpush1.msra.mxu0 %v791
    %827 = vmatprep.subr.mxu0 0.0
    %828 = vmatpush1.msra.mxu0 %v792
    %829 = vmatprep.subr.mxu0 0.0
    %830 = vmatpush1.msra.mxu0 %v793
    %831 = vmatprep.subr.mxu0 0.0
    %832 = vmatpush1.msra.mxu0 %v794
    %833 = vmatprep.subr.mxu0 0.0
    %834 = vmatpush1.msra.mxu0 %v795
    %835 = vmatprep.subr.mxu0 0.0
    %836 = vmatpush1.msra.mxu0 %v796
    %837 = vmatprep.subr.mxu0 0.0
    %838 = vmatpush1.msra.mxu0 %v797
    %839 = vmatprep.subr.mxu0 0.0
    %840 = vmatpush1.msra.mxu0 %v798
    %841 = vmatprep.subr.mxu0 0.0
    %842 = vmatpush1.msra.mxu0 %v799
    %843 = vmatprep.subr.mxu0 0.0
    %844 = vmatpush1.msra.mxu0 %v800
    %845 = vmatprep.subr.mxu0 0.0
    %846 = vmatpush1.msra.mxu0 %v801
    %847 = vmatprep.subr.mxu0 0.0
    %848 = vmatpush1.msra.mxu0 %v802
    %849 = vmatprep.subr.mxu0 0.0
    %850 = vmatpush1.msra.mxu0 %v803
    %851 = vmatprep.subr.mxu0 0.0
    %852 = vmatpush1.msra.mxu0 %v804
    %853 = vmatprep.subr.mxu0 0.0
    %854 = vmatpush1.msra.mxu0 %v805
    %855 = vmatprep.subr.mxu0 0.0
    %856 = vmatpush1.msra.mxu0 %v806
    %857 = vmatprep.subr.mxu0 0.0
    %858 = vmatpush1.msra.mxu0 %v807
    %859 = vmatprep.subr.mxu0 0.0
    %860 = vmatpush1.msra.mxu0 %v808
    %861 = vmatprep.subr.mxu0 0.0
    %862 = vmatpush1.msra.mxu0 %v809
    %863 = vmatprep.subr.mxu0 0.0
    %864 = vmatpush1.msra.mxu0 %v810
    %865 = vmatprep.subr.mxu0 0.0
    %866 = vmatpush1.msra.mxu0 %v811
    %867 = vmatprep.subr.mxu0 0.0
    %868 = vmatpush1.msra.mxu0 %v812
    %869 = vmatprep.subr.mxu0 0.0
    %870 = vmatpush1.msra.mxu0 %v813
    %871 = vmatprep.subr.mxu0 0.0
    %872 = vmatpush1.msra.mxu0 %v814
    %873 = vmatprep.subr.mxu0 0.0
    %874 = vmatpush1.msra.mxu0 %v815
    %875 = vmatprep.subr.mxu0 0.0
    %876 = vmatpush1.msra.mxu0 %v816
    %877 = vmatprep.subr.mxu0 0.0
    %878 = vmatpush1.msra.mxu0 %v817
    %879 = vmatprep.subr.mxu0 0.0
    %880 = vmatpush1.msra.mxu0 %v818
    %881 = vmatprep.subr.mxu0 0.0
    %882 = vmatpush1.msra.mxu0 %v819
    %883 = vmatprep.subr.mxu0 0.0
    %884 = vmatpush1.msra.mxu0 %v820
    %885 = vmatprep.subr.mxu0 0.0
    %886 = vmatpush1.msra.mxu0 %v821
    %887 = vmatprep.mubr.f32.mxu0 %v789
    %888 = vmatmul.mubr.f32.gmra.mrb[0].mxu0 %v788
    %v889 = vpop.f32.mrb[0].mxu0
    %v890 = vadd.f32 %v822, %v889
    %v891 = vpop.f32.mrb[0].mxu0
    %892 = vdwg.mxu0
    %893 = vst [vmem:[#allocation11] sm:$0x1] %v890
    // Predicated region
    $region58: #{tpu_custom_call.1} parent=1 // pred_check
      _
    $region59: #{tpu_custom_call.1} parent=1 // pred_check_branch
      %895 = sbr.rel (0) target = $region61
    $region60: #{tpu_custom_call.1} parent=1 // pred_region
      %s897 = ssub.s32 16, 16
      %898 = vsyncadd [#allocation4], %s897
      %s900 = sshll.u32 [#allocation11], 4
      %s901 = int_to_ptr.vmem [resolvable:$true] %s900
      %903 = dma.vmem_to_hbm [thread:$0]  %s901, 16, %s9, [#allocation4]
    $region61: #{tpu_custom_call.1} parent=1 // pred_fallthru
      _
    // Predicated region
    $region62: #{tpu_custom_call.1} parent=1 // pred_check
      _
    $region63: #{tpu_custom_call.1} parent=1 // pred_check_branch
      %905 = sbr.rel (0) target = $region65
    $region64: #{tpu_custom_call.1} parent=1 // pred_region
      %906 = dma.done [#allocation4], 16
    $region65: #{tpu_custom_call.1} parent=1 // pred_fallthru
      _
    %907 = vsyncpa [#allocation3], 1
    %908 = vsyncpa [#allocation6], 1
    %909 = vsyncpa [#allocation9], 1
    %910 = vsyncpa [#allocation4], 1

</llo_original>
